<compile_context>
chip_gen: v7x
topology: tpu7x:2x2x1
jax: 0.10.0
libtpu: 0.0.40
codegen_flags: <defaults>
</compile_context>

<pallas_src>
import math
from functools import partial

import jax
import jax.numpy as jnp
from jax import lax
from jax.experimental import pallas as pl
from jax.experimental.pallas import tpu as pltpu

_SQRT_HALF = 0.7071067811865476


def _gelu_exact(x):
    # nn.GELU() default: exact erf formulation.
    return 0.5 * x * (1.0 + lax.erf(x * _SQRT_HALF))


# ---------------------------------------------------------------------------
# Fused Pallas kernel: skip + GELU (+ TransposedLN) + output TransposedLinear
# ---------------------------------------------------------------------------
def _post_kernel(m_ref, s_ref, y_ref, u_ref, dt_ref, w_ref, b_ref, o_ref,
                 *, C, H, apply_ln):
    """
    m_ref, s_ref: (1,) SMEM TransposedLN scalars (used only if apply_ln)
    y_ref : (1, C*H, TL)  FFT-conv output tile
    u_ref : (1, H, TL)    input tile (for the D skip connection)
    dt_ref: (H, C)        D transposed
    w_ref : (H, C*H)      output_linear weight
    b_ref : (H, 1)        output_linear bias
    o_ref : (1, H, TL)    output tile
    """
    u = u_ref[0].astype(jnp.float32)                       # (H, TL)
    y = y_ref[0].astype(jnp.float32)                       # (C*H, TL)
    dt = dt_ref[...].astype(jnp.float32)                   # (H, C)
    w = w_ref[...].astype(jnp.float32)                     # (H, C*H)

    # skip + activation, per channel group (C is a small static int)
    zs = []
    for c in range(C):
        yc = y[c * H:(c + 1) * H, :]                       # (H, TL) static slice
        dc = dt[:, c:c + 1]                                # (H, 1)
        zs.append(_gelu_exact(yc + u * dc))

    if apply_ln:
        # TransposedLN (scalar=True) over the C*H dim, per (b, l) column:
        #   std, mean = std_mean(z, dim=1, unbiased=False); z = s/std*(z-mean+m)
        inv_n = 1.0 / (C * H)
        tot = zs[0]
        for zc in zs[1:]:
            tot = tot + zc
        mean = jnp.sum(tot, axis=0, keepdims=True) * inv_n          # (1, TL)
        var = jnp.zeros_like(mean)
        for zc in zs:
            d0 = zc - mean
            var = var + jnp.sum(d0 * d0, axis=0, keepdims=True)
        var = var * inv_n
        scale = s_ref[0] * lax.rsqrt(var)                           # (1, TL)
        shift = m_ref[0]
        zs = [scale * (zc - mean + shift) for zc in zs]

    # output TransposedLinear: out[v, l] = sum_u W[v, u] * z[u, l] + b[v]
    acc = jnp.dot(w[:, 0:H], zs[0], preferred_element_type=jnp.float32)
    for c in range(1, C):
        acc = acc + jnp.dot(w[:, c * H:(c + 1) * H], zs[c],
                            preferred_element_type=jnp.float32)
    o_ref[0] = (acc + b_ref[...].astype(jnp.float32)).astype(o_ref.dtype)


def _pick_tl(l_pad, bytes_per_lane, budget_bytes):
    """Largest multiple of 128 dividing l_pad with TL * bytes_per_lane <= budget."""
    k = l_pad // 128
    cap = max(1, budget_bytes // max(1, bytes_per_lane * 128))
    best = 1
    for d in range(1, k + 1):
        if k % d == 0 and d <= cap:
            best = d
    return 128 * best


def gconv_post_pallas(y_conv, u, D, w_out, b_out, norm_m, norm_s, *,
                      apply_ln, tile_budget_bytes=4 * 1024 * 1024):
    """Fused skip + GELU (+ TransposedLN) + output linear.

    y_conv: (B, C*H, L); u: (B, H, L); D: (C, H); w_out: (H, C*H); b_out: (H,)
    norm_m / norm_s: (1,) TransposedLN scalars.  Returns (B, H, L).
    """
    B, CH, L = y_conv.shape
    H = u.shape[1]
    C = CH // H
    assert C * H == CH

    # Lane-dense tiles: pad L to a multiple of 128 (unmasked vst). The math is
    # purely per-(b, l) column, so the padded columns are garbage that is
    # sliced off afterwards without affecting real columns.
    L_pad = ((L + 127) // 128) * 128
    if L_pad != L:
        padcfg = ((0, 0), (0, 0), (0, L_pad - L))
        y_conv = jnp.pad(y_conv, padcfg)
        u = jnp.pad(u, padcfg)

    bytes_per_lane = (CH + 2 * H) * 4            # y + u + out, f32, per lane
    TL = _pick_tl(L_pad, bytes_per_lane, tile_budget_bytes)
    grid = (B, L_pad // TL)

    d_t = jnp.asarray(D, jnp.float32).T                    # (H, C)
    b2 = jnp.asarray(b_out, jnp.float32).reshape(H, 1)     # (H, 1)

    kernel = partial(_post_kernel, C=C, H=H, apply_ln=apply_ln)

    out = pl.pallas_call(
        kernel,
        out_shape=jax.ShapeDtypeStruct((B, H, L_pad), y_conv.dtype),
        grid_spec=pltpu.PrefetchScalarGridSpec(
            num_scalar_prefetch=0,
            grid=grid,
            in_specs=[
                pl.BlockSpec(memory_space=pltpu.SMEM),                    # norm m (1,)
                pl.BlockSpec(memory_space=pltpu.SMEM),                    # norm s (1,)
                pl.BlockSpec((1, CH, TL), lambda b, l: (b, 0, l)),        # y tile
                pl.BlockSpec((1, H, TL), lambda b, l: (b, 0, l)),         # u tile
                pl.BlockSpec((H, C), lambda b, l: (0, 0)),                # D^T
                pl.BlockSpec((H, CH), lambda b, l: (0, 0)),               # W_out
                pl.BlockSpec((H, 1), lambda b, l: (0, 0)),                # bias
            ],
            out_specs=pl.BlockSpec((1, H, TL), lambda b, l: (b, 0, l)),
        ),
        compiler_params=pltpu.CompilerParams(
            dimension_semantics=("parallel", "parallel"),
            vmem_limit_bytes=48 * 1024 * 1024,
        ),
    )(jnp.asarray(norm_m, jnp.float32), jnp.asarray(norm_s, jnp.float32),
      y_conv, u, d_t, jnp.asarray(w_out, jnp.float32), b2)

    return out[:, :, :L] if L_pad != L else out


# ---------------------------------------------------------------------------
# Kernel construction (cat mode) and FFT long convolution (plain JAX / XLA)
# ---------------------------------------------------------------------------
def _pt_linear_interp(x, scale):
    """F.interpolate(x, scale_factor=scale, mode='linear', align_corners=False)."""
    if scale == 1:
        return x
    l_in = x.shape[-1]
    l_out = l_in * scale
    coords = (jnp.arange(l_out, dtype=jnp.float32) + 0.5) / scale - 0.5
    coords = jnp.clip(coords, 0.0, l_in - 1)
    i0 = jnp.floor(coords).astype(jnp.int32)
    i1 = jnp.minimum(i0 + 1, l_in - 1)
    w = coords - i0.astype(jnp.float32)
    return x[..., i0] * (1.0 - w) + x[..., i1] * w


def _build_conv_kernel(kernel_list, multiplier, L, *, init_scale=0):
    """'cat_*' mode: interpolate each scale, apply multiplier powers, concat,
    then normalize with first-call kernel_norm semantics."""
    num_scales = len(kernel_list)
    pieces = []
    for i, ker in enumerate(kernel_list):
        scale = 2 ** (max(0, i - 1) + init_scale)
        pieces.append(_pt_linear_interp(ker, scale) * multiplier ** (num_scales - i - 1))
    k = jnp.concatenate(pieces, axis=-1)                       # (C, H, Lk)
    kernel_norm = jnp.linalg.norm(k, axis=-1, keepdims=True)   # first forward call
    if k.shape[-1] > L:
        k = k[..., :L]
    elif k.shape[-1] < L:
        k = jnp.pad(k, ((0, 0), (0, 0), (0, L - k.shape[-1])))
    return k / kernel_norm


def _gconv_post_ref(y, u, D, w_out, b_out, norm_m, norm_s, ln):
    """Pure-JAX reference for the fused post stage (y: (B, C, H, L))."""
    B, C, H, L = y.shape
    z = y + u[:, None, :, :] * D[None, :, :, None]
    z = z.reshape(B, C * H, L).astype(jnp.float32)
    z = _gelu_exact(z)
    if ln:
        mean = jnp.mean(z, axis=1, keepdims=True)
        std = jnp.sqrt(jnp.mean((z - mean) ** 2, axis=1, keepdims=True))
        z = (norm_s[0] / std) * (z - mean + norm_m[0])
    out = jnp.einsum('vu,bul->bvl', jnp.asarray(w_out, jnp.float32), z,
                     precision=lax.Precision.HIGHEST)
    return (out + b_out[None, :, None]).astype(u.dtype)


def gconv_forward(u, params, *, ln=False, transposed=True, init_scale=0,
                  use_pallas=True):
    """GConv.forward (mode='cat_randn', bidirectional=False, linear=False,
    activation='gelu', dropout off)."""
    if not transposed:
        u = jnp.swapaxes(u, -1, -2)
    B, H, L = u.shape
    D = params['D']
    C = D.shape[0]

    k = _build_conv_kernel(params['kernel_list'], params['multiplier'], L,
                           init_scale=init_scale)              # (C, H, L)

    # TODO(synk): FFT long convolution (rfft/irfft) has no Pallas equivalent;
    # it stays on XLA.
    k_f = jnp.fft.rfft(k, n=2 * L)                             # (C, H, L+1)
    u_f = jnp.fft.rfft(u, n=2 * L)                             # (B, H, L+1)
    y_f = u_f[:, None, :, :] * k_f[None, :, :, :]              # (B, C, H, L+1)
    y = jnp.fft.irfft(y_f, n=2 * L)[..., :L].astype(jnp.float32)   # (B, C, H, L)

    if use_pallas:
        out = gconv_post_pallas(y.reshape(B, C * H, L), u, D,
                                params['out_w'], params['out_b'],
                                params['norm_m'], params['norm_s'],
                                apply_ln=ln)
    else:
        out = _gconv_post_ref(y, u, D, params['out_w'], params['out_b'],
                              params['norm_m'], params['norm_s'], ln)

    if not transposed:
        out = jnp.swapaxes(out, -1, -2)
    return out


# ---------------------------------------------------------------------------
if __name__ == "__main__":
    B, H, L = 2, 16, 64          # batch, d_model, l_max
    kernel_dim = 16
    init_scale = 0
    num_scales = 1 + math.ceil(math.log2(L / kernel_dim)) - init_scale  # = 3

    def make_params(key, C):
        keys = jax.random.split(key, num_scales + 3)
        kernel_list = [jax.random.normal(keys[i], (C, H, kernel_dim), jnp.float32)
                       for i in range(num_scales)]
        D = jax.random.normal(keys[num_scales], (C, H), jnp.float32)
        out_w = (jax.random.normal(keys[num_scales + 1], (H, C * H), jnp.float32)
                 / math.sqrt(C * H))
        out_b = 0.1 * jax.random.normal(keys[num_scales + 2], (H,), jnp.float32)
        return dict(kernel_list=kernel_list,
                    multiplier=jnp.full((1, H, 1), 2.0, jnp.float32),  # decay_min=decay_max=2
                    D=D, out_w=out_w, out_b=out_b,
                    norm_m=jnp.zeros((1,), jnp.float32),   # TransposedLN m (init 0)
                    norm_s=jnp.ones((1,), jnp.float32))    # TransposedLN s (init 1)

    root = jax.random.PRNGKey(0)
    k_a, k_b = jax.random.split(root)
    configs = [
        dict(name="channels=1, ln=False (GConv defaults)", C=1, ln=False, key=k_a),
        dict(name="channels=2, ln=True (TransposedLN path)", C=2, ln=True, key=k_b),
    ]
    for cfg in configs:
        params = make_params(cfg['key'], cfg['C'])
        u = jax.random.normal(jax.random.fold_in(cfg['key'], 123), (B, H, L),
                              jnp.float32)
        y = gconv_forward(u, params, ln=cfg['ln'], init_scale=init_scale,
                          use_pallas=True)
        jax.block_until_ready(y)
        y_ref = gconv_forward(u, params, ln=cfg['ln'], init_scale=init_scale,
                              use_pallas=False)
        assert y.shape == (B, H, L), f"bad shape: {y.shape}"
        # 1e-2 tolerance: MXU f32 matmul (default precision) vs HIGHEST-precision
        # XLA reference; formula errors would be O(1).
        assert jnp.allclose(y, y_ref, atol=1e-2, rtol=1e-2), \
            f"mismatch vs reference: {cfg['name']}"
    print("KERNEL_OK")
</pallas_src>

<mosaic_0001>
module attributes {stable_mosaic.version = 11 : i64} {
  func.func @_post_kernel(%arg0: i32, %arg1: i32, %arg2: memref<1xf32, #tpu.memory_space<smem>>, %arg3: memref<1xf32, #tpu.memory_space<smem>>, %arg4: memref<1x16x128xf32, #tpu.memory_space<vmem>>, %arg5: memref<1x16x128xf32, #tpu.memory_space<vmem>>, %arg6: memref<16x1xf32, #tpu.memory_space<vmem>>, %arg7: memref<16x16xf32, #tpu.memory_space<vmem>>, %arg8: memref<16x1xf32, #tpu.memory_space<vmem>>, %arg9: memref<1x16x128xf32, #tpu.memory_space<vmem>>) attributes {dimension_semantics = [#tpu.dimension_semantics<parallel>, #tpu.dimension_semantics<parallel>], iteration_bounds = array<i64: 2, 1>, scalar_prefetch = 0 : i64, scratch_operands = 0 : i64, tpu.core_type = #tpu.core_type<tc>, window_params = [{transform_indices = @transform_0, window_bounds = array<i64: 1>}, {transform_indices = @transform_1, window_bounds = array<i64: 1>}, {transform_indices = @transform_2, window_bounds = array<i64: 1, 16, 128>}, {transform_indices = @transform_3, window_bounds = array<i64: 1, 16, 128>}, {pipeline_mode = #tpu.pipeline_mode<synchronous>, transform_indices = @transform_4, window_bounds = array<i64: 16, 1>}, {pipeline_mode = #tpu.pipeline_mode<synchronous>, transform_indices = @transform_5, window_bounds = array<i64: 16, 16>}, {pipeline_mode = #tpu.pipeline_mode<synchronous>, transform_indices = @transform_6, window_bounds = array<i64: 16, 1>}, {transform_indices = @transform_7, window_bounds = array<i64: 1, 16, 128>}]} {
    %c0 = arith.constant 0 : index
    %c0_0 = arith.constant 0 : index
    %c0_1 = arith.constant 0 : index
    %0 = vector.load %arg5[%c0, %c0_0, %c0_1] : memref<1x16x128xf32, #tpu.memory_space<vmem>>, vector<1x16x128xf32>
    %1 = vector.shape_cast %0 : vector<1x16x128xf32> to vector<16x128xf32>
    %c0_2 = arith.constant 0 : index
    %c0_3 = arith.constant 0 : index
    %c0_4 = arith.constant 0 : index
    %2 = vector.load %arg4[%c0_2, %c0_3, %c0_4] : memref<1x16x128xf32, #tpu.memory_space<vmem>>, vector<1x16x128xf32>
    %3 = vector.shape_cast %2 : vector<1x16x128xf32> to vector<16x128xf32>
    %c0_5 = arith.constant 0 : index
    %c0_6 = arith.constant 0 : index
    %4 = vector.load %arg6[%c0_5, %c0_6] : memref<16x1xf32, #tpu.memory_space<vmem>>, vector<16x1xf32>
    %c0_7 = arith.constant 0 : index
    %c0_8 = arith.constant 0 : index
    %5 = vector.load %arg7[%c0_7, %c0_8] : memref<16x16xf32, #tpu.memory_space<vmem>>, vector<16x16xf32>
    %6 = vector.broadcast %4 : vector<16x1xf32> to vector<16x128xf32>
    %7 = arith.mulf %1, %6 : vector<16x128xf32>
    %8 = arith.addf %3, %7 : vector<16x128xf32>
    %cst = arith.constant 5.000000e-01 : f32
    %9 = vector.broadcast %cst : f32 to vector<16x128xf32>
    %10 = arith.mulf %9, %8 : vector<16x128xf32>
    %cst_9 = arith.constant 0.707106769 : f32
    %11 = vector.broadcast %cst_9 : f32 to vector<16x128xf32>
    %12 = arith.mulf %8, %11 : vector<16x128xf32>
    %13 = math.erf %12 : vector<16x128xf32>
    %cst_10 = arith.constant 1.000000e+00 : f32
    %14 = vector.broadcast %cst_10 : f32 to vector<16x128xf32>
    %15 = arith.addf %14, %13 : vector<16x128xf32>
    %16 = arith.mulf %10, %15 : vector<16x128xf32>
    %cst_11 = arith.constant dense<0.000000e+00> : vector<16x128xf32>
    %17 = tpu.matmul %5, %16, %cst_11 {dimension_numbers = #tpu.dot_dimension_numbers<[1], [0], [0], [1], [0, 0, 1, 1], [], []>} : vector<16x16xf32>, vector<16x128xf32>, vector<16x128xf32> -> vector<16x128xf32>
    %c0_12 = arith.constant 0 : index
    %c0_13 = arith.constant 0 : index
    %18 = vector.load %arg8[%c0_12, %c0_13] : memref<16x1xf32, #tpu.memory_space<vmem>>, vector<16x1xf32>
    %19 = vector.broadcast %18 : vector<16x1xf32> to vector<16x128xf32>
    %20 = arith.addf %17, %19 : vector<16x128xf32>
    %c0_14 = arith.constant 0 : index
    %c0_15 = arith.constant 0 : index
    %c0_16 = arith.constant 0 : index
    %21 = vector.load %arg9[%c0_14, %c0_15, %c0_16] : memref<1x16x128xf32, #tpu.memory_space<vmem>>, vector<1x16x128xf32>
    %22 = vector.shape_cast %21 : vector<1x16x128xf32> to vector<16x128xf32>
    %23 = vector.shape_cast %20 : vector<16x128xf32> to vector<1x16x128xf32>
    tpu.vector_store %arg9[%c0_14, %c0_15, %c0_16], %23 {strides = array<i32>} : memref<1x16x128xf32, #tpu.memory_space<vmem>>, vector<1x16x128xf32>,
    return
  }
  func.func @transform_0(%arg0: i32, %arg1: i32) -> i32 {
    %c0_i32 = arith.constant 0 : i32
    %c0_i32_0 = arith.constant 0 : i32
    return %c0_i32 : i32
  }
  func.func @transform_1(%arg0: i32, %arg1: i32) -> i32 {
    %c0_i32 = arith.constant 0 : i32
    %c0_i32_0 = arith.constant 0 : i32
    return %c0_i32 : i32
  }
  func.func @transform_2(%arg0: i32, %arg1: i32) -> (i32, i32, i32) {
    %c0_i32 = arith.constant 0 : i32
    %c0_i32_0 = arith.constant 0 : i32
    return %arg0, %c0_i32, %arg1 : i32, i32, i32
  }
  func.func @transform_3(%arg0: i32, %arg1: i32) -> (i32, i32, i32) {
    %c0_i32 = arith.constant 0 : i32
    %c0_i32_0 = arith.constant 0 : i32
    return %arg0, %c0_i32, %arg1 : i32, i32, i32
  }
  func.func @transform_4(%arg0: i32, %arg1: i32) -> (i32, i32) {
    %c0_i32 = arith.constant 0 : i32
    %c0_i32_0 = arith.constant 0 : i32
    %c0_i32_1 = arith.constant 0 : i32
    return %c0_i32, %c0_i32_0 : i32, i32
  }
  func.func @transform_5(%arg0: i32, %arg1: i32) -> (i32, i32) {
    %c0_i32 = arith.constant 0 : i32
    %c0_i32_0 = arith.constant 0 : i32
    %c0_i32_1 = arith.constant 0 : i32
    return %c0_i32, %c0_i32_0 : i32, i32
  }
  func.func @transform_6(%arg0: i32, %arg1: i32) -> (i32, i32) {
    %c0_i32 = arith.constant 0 : i32
    %c0_i32_0 = arith.constant 0 : i32
    %c0_i32_1 = arith.constant 0 : i32
    return %c0_i32, %c0_i32_0 : i32, i32
  }
  func.func @transform_7(%arg0: i32, %arg1: i32) -> (i32, i32, i32) {
    %c0_i32 = arith.constant 0 : i32
    %c0_i32_0 = arith.constant 0 : i32
    return %arg0, %c0_i32, %arg1 : i32, i32, i32
  }
}

</mosaic_0001>

<llo_original>
// kernel: tpu_custom_call.1
$region0: #{tpu_custom_call.1}
  #allocation0 [shape = 'u32[]', space=smem, size = 0x4, offset = 0x4, fixed_abs, tag = 'smem constant byte address 0x4 - core index']
  #allocation1 [shape = 'u32[144,128]{1,0:T(1,128)}', space=vmem, size = 0x12000, scoped, tag = 'internal scratch']
  #allocation2 [shape = 'f32[1]{0:T(128)S(6)}', space=smem, size = 0x200, scoped, tag = 'scoped memory for tpu_custom_call.1']
  #allocation3 [shape = 'f32[1]{0:T(128)S(6)}', space=smem, size = 0x200, scoped, tag = 'scoped memory for tpu_custom_call.1']
  %s0 = inlined_call_operand.<no memory space> [shape: f32[1], index: 0, kind: input, shape index: {}]
  %s1 = inlined_call_operand.<no memory space> [shape: f32[1], index: 1, kind: input, shape index: {}]
  %s2 = inlined_call_operand.vmem [shape: f32[2,16,128], index: 2, kind: input, shape index: {}]
  %s3 = inlined_call_operand.hbm [shape: f32[2,16,128], index: 3, kind: input, shape index: {}]
  %s4 = inlined_call_operand.vmem [shape: f32[16,1], index: 4, kind: input, shape index: {}]
  %s5 = inlined_call_operand.vmem [shape: f32[16,16], index: 5, kind: input, shape index: {}]
  %s6 = inlined_call_operand.vmem [shape: f32[16,1], index: 6, kind: input, shape index: {}]
  %s7 = inlined_call_operand.hbm [shape: f32[2,16,128], index: 7, kind: output, shape index: {}]
  %s8 = sld [smem:[#allocation0]]
  $region65: #{tpu_custom_call.1} parent=0
    _
  %s10 = ssub.s32 1, %s8
  %s11 = scalar_select 0, %s10, %s8
  %12 = sst [smem:[#allocation2]] %s0
  %13 = sst [smem:[#allocation3]] %s1
  $region1: #{tpu_custom_call.1} parent=0
    #allocation4 [shape = 'u8[16384]{0}', space=vmem, size = 0x4000, scoped, tag = 'input window, operand 3']
    #allocation5 [shape = 's32[2]{0}', space=sflag, size = 0x8, scoped, tag = 'scoped memory for tpu_custom_call.1']
    #allocation6 [shape = 's32[2]{0}', space=sflag, size = 0x8, scoped, tag = 'scoped memory for tpu_custom_call.1']
    #allocation7 [shape = 'u8[16384]{0}', space=vmem, size = 0x4000, scoped, tag = 'output window, operand 0']
    %14 = vsyncpa [#allocation5], 0
    %s15 = scalar_lea.sflag [#allocation5], 1
    %16 = vsyncpa %s15, 0
    %17 = vsyncpa [#allocation6], 0
    %s18 = scalar_lea.sflag [#allocation6], 1
    %19 = vsyncpa %s18, 0
    loop: start=0, step=1, limit=4
    $region2: #{tpu_custom_call.1} parent=1 // loop_pre_header
      _
    $region3: #{tpu_custom_call.1} parent=1 // loop_header
      %s21 = sphi 0, %s25
      %p22 = scmp.ge.s32.totalorder %s21, 4
      %s28 = sphi 0, %s40
      %s29 = sphi 0, %s36
      %s30 = sphi 0, %s28
      %s31 = sphi 0, %s29
      %s32 = sphi 0, %s30
      %s33 = sphi 0, %s31
      %s41 = sphi 0, %s41
      %s43 = sphi 0, %s41
      %s44 = sphi 0, %s43
      %s58 = sphi 0, %s44
      %s62 = sphi 0, %s62
      %s64 = sphi 0, %s62
      %s65 = sphi 0, %s64
      %s79 = sphi 0, %s65
      %s87 = sphi 0, %s89
      %s90 = sphi 0, %s87
      %s91 = sphi 0, %s90
      %s107 = sphi 0, %s91
      %s115 = sphi 0, %s117
      %s118 = sphi 0, %s115
      %s119 = sphi 0, %s118
      %s135 = sphi 0, %s119
      %s139 = sphi 0, %s139
      %s141 = sphi 0, %s139
      %s142 = sphi 0, %s141
      %s156 = sphi 0, %s142
      %s160 = sphi 0, %s160
      %s162 = sphi 0, %s160
      %s163 = sphi 0, %s162
      %s177 = sphi 0, %s163
      %s181 = sphi 0, %s181
      %s183 = sphi 0, %s181
      %s184 = sphi 0, %s183
      %s198 = sphi 0, %s184
      %s206 = sphi 0, %s208
      %s209 = sphi 0, %s206
      %s210 = sphi 0, %s209
      %s226 = sphi 0, %s210
    $region4: #{tpu_custom_call.1} parent=1 // loop_header_branch
      %24 = sbr.rel (%p22) target = $region8
    $region5: #{tpu_custom_call.1} parent=1 // loop_body
      %s26 = ssub.s32 %s21, 1
      %s27 = ssub.s32 %s21, 2
      %s34 = sadd.s32 1, %s29
      %p35 = scmp.ge.s32.totalorder %s34, 1
      %s36 = scalar_select %p35, 0, %s34
      %s37 = sadd.s32 1, %s28
      %s38 = scalar_select %p35, %s37, %s28
      %p39 = scmp.ge.s32.totalorder %s38, 2
      %s40 = scalar_select %p39, 0, %s38
      %s42 = sadd.s32 %s41, 1
      %p45 = scmp.eq.s32.totalorder %s21, 1
      %p46 = scmp.ne.s32.totalorder %s41, %s43
      %p47 = scmp.eq.s32.totalorder %s21, 0
      %p48 = por %p46, %p47
      %p49 = scmp.ne.s32.totalorder %s41, %s43
      %p50 = scmp.eq.s32.totalorder %s26, 1
      %p51 = por %p49, %p50
      %p52 = scmp.ne.s32.totalorder %s43, %s44
      %p53 = scmp.eq.s32.totalorder %s26, 0
      %p54 = por %p52, %p53
      %p55 = scmp.ne.s32.totalorder %s43, %s44
      %p56 = scmp.eq.s32.totalorder %s27, 1
      %p57 = por %p55, %p56
      %p59 = scmp.ne.s32.totalorder %s44, %s58
      %p60 = scmp.eq.s32.totalorder %s27, 0
      %p61 = por %p59, %p60
      %s63 = sadd.s32 %s62, 1
      %p66 = scmp.eq.s32.totalorder %s21, 1
      %p67 = scmp.ne.s32.totalorder %s62, %s64
      %p68 = scmp.eq.s32.totalorder %s21, 0
      %p69 = por %p67, %p68
      %p70 = scmp.ne.s32.totalorder %s62, %s64
      %p71 = scmp.eq.s32.totalorder %s26, 1
      %p72 = por %p70, %p71
      %p73 = scmp.ne.s32.totalorder %s64, %s65
      %p74 = scmp.eq.s32.totalorder %s26, 0
      %p75 = por %p73, %p74
      %p76 = scmp.ne.s32.totalorder %s64, %s65
      %p77 = scmp.eq.s32.totalorder %s27, 1
      %p78 = por %p76, %p77
      %p80 = scmp.ne.s32.totalorder %s65, %s79
      %p81 = scmp.eq.s32.totalorder %s27, 0
      %p82 = por %p80, %p81
      %s83 = ssub.s32 %s28, %s40
      %s84 = ssub.s32 %s29, %s36
      %s85 = sor.u32 %s83, %s84
      %p86 = scmp.eq.s32.totalorder %s85, 0
      %s88 = sadd.s32 %s87, 1
      %s89 = scalar_select %p86, %s87, %s88
      %p92 = pneg %p86
      %p93 = scmp.eq.s32.totalorder %s21, 1
      %p94 = por %p92, %p93
      %p95 = scmp.ne.s32.totalorder %s87, %s90
      %p96 = scmp.eq.s32.totalorder %s21, 0
      %p97 = por %p95, %p96
      %p98 = scmp.ne.s32.totalorder %s87, %s90
      %p99 = scmp.eq.s32.totalorder %s26, 1
      %p100 = por %p98, %p99
      %p101 = scmp.ne.s32.totalorder %s90, %s91
      %p102 = scmp.eq.s32.totalorder %s26, 0
      %p103 = por %p101, %p102
      %p104 = scmp.ne.s32.totalorder %s90, %s91
      %p105 = scmp.eq.s32.totalorder %s27, 1
      %p106 = por %p104, %p105
      %p108 = scmp.ne.s32.totalorder %s91, %s107
      %p109 = scmp.eq.s32.totalorder %s27, 0
      %p110 = por %p108, %p109
      %s111 = ssub.s32 %s28, %s40
      %s112 = ssub.s32 %s29, %s36
      %s113 = sor.u32 %s111, %s112
      %p114 = scmp.eq.s32.totalorder %s113, 0
      %s116 = sadd.s32 %s115, 1
      %s117 = scalar_select %p114, %s115, %s116
      %p120 = pneg %p114
      %p121 = scmp.eq.s32.totalorder %s21, 1
      %p122 = por %p120, %p121
      %p123 = scmp.ne.s32.totalorder %s115, %s118
      %p124 = scmp.eq.s32.totalorder %s21, 0
      %p125 = por %p123, %p124
      %p126 = scmp.ne.s32.totalorder %s115, %s118
      %p127 = scmp.eq.s32.totalorder %s26, 1
      %p128 = por %p126, %p127
      %p129 = scmp.ne.s32.totalorder %s118, %s119
      %p130 = scmp.eq.s32.totalorder %s26, 0
      %p131 = por %p129, %p130
      %p132 = scmp.ne.s32.totalorder %s118, %s119
      %p133 = scmp.eq.s32.totalorder %s27, 1
      %p134 = por %p132, %p133
      %p136 = scmp.ne.s32.totalorder %s119, %s135
      %p137 = scmp.eq.s32.totalorder %s27, 0
      %p138 = por %p136, %p137
      %s140 = sadd.s32 %s139, 1
      %p143 = scmp.eq.s32.totalorder %s21, 1
      %p144 = scmp.ne.s32.totalorder %s139, %s141
      %p145 = scmp.eq.s32.totalorder %s21, 0
      %p146 = por %p144, %p145
      %p147 = scmp.ne.s32.totalorder %s139, %s141
      %p148 = scmp.eq.s32.totalorder %s26, 1
      %p149 = por %p147, %p148
      %p150 = scmp.ne.s32.totalorder %s141, %s142
      %p151 = scmp.eq.s32.totalorder %s26, 0
      %p152 = por %p150, %p151
      %p153 = scmp.ne.s32.totalorder %s141, %s142
      %p154 = scmp.eq.s32.totalorder %s27, 1
      %p155 = por %p153, %p154
      %p157 = scmp.ne.s32.totalorder %s142, %s156
      %p158 = scmp.eq.s32.totalorder %s27, 0
      %p159 = por %p157, %p158
      %s161 = sadd.s32 %s160, 1
      %p164 = scmp.eq.s32.totalorder %s21, 1
      %p165 = scmp.ne.s32.totalorder %s160, %s162
      %p166 = scmp.eq.s32.totalorder %s21, 0
      %p167 = por %p165, %p166
      %p168 = scmp.ne.s32.totalorder %s160, %s162
      %p169 = scmp.eq.s32.totalorder %s26, 1
      %p170 = por %p168, %p169
      %p171 = scmp.ne.s32.totalorder %s162, %s163
      %p172 = scmp.eq.s32.totalorder %s26, 0
      %p173 = por %p171, %p172
      %p174 = scmp.ne.s32.totalorder %s162, %s163
      %p175 = scmp.eq.s32.totalorder %s27, 1
      %p176 = por %p174, %p175
      %p178 = scmp.ne.s32.totalorder %s163, %s177
      %p179 = scmp.eq.s32.totalorder %s27, 0
      %p180 = por %p178, %p179
      %s182 = sadd.s32 %s181, 1
      %p185 = scmp.eq.s32.totalorder %s21, 1
      %p186 = scmp.ne.s32.totalorder %s181, %s183
      %p187 = scmp.eq.s32.totalorder %s21, 0
      %p188 = por %p186, %p187
      %p189 = scmp.ne.s32.totalorder %s181, %s183
      %p190 = scmp.eq.s32.totalorder %s26, 1
      %p191 = por %p189, %p190
      %p192 = scmp.ne.s32.totalorder %s183, %s184
      %p193 = scmp.eq.s32.totalorder %s26, 0
      %p194 = por %p192, %p193
      %p195 = scmp.ne.s32.totalorder %s183, %s184
      %p196 = scmp.eq.s32.totalorder %s27, 1
      %p197 = por %p195, %p196
      %p199 = scmp.ne.s32.totalorder %s184, %s198
      %p200 = scmp.eq.s32.totalorder %s27, 0
      %p201 = por %p199, %p200
      %s202 = ssub.s32 %s28, %s40
      %s203 = ssub.s32 %s29, %s36
      %s204 = sor.u32 %s202, %s203
      %p205 = scmp.eq.s32.totalorder %s204, 0
      %s207 = sadd.s32 %s206, 1
      %s208 = scalar_select %p205, %s206, %s207
      %p211 = pneg %p205
      %p212 = scmp.eq.s32.totalorder %s21, 1
      %p213 = por %p211, %p212
      %p214 = scmp.ne.s32.totalorder %s206, %s209
      %p215 = scmp.eq.s32.totalorder %s21, 0
      %p216 = por %p214, %p215
      %p217 = scmp.ne.s32.totalorder %s206, %s209
      %p218 = scmp.eq.s32.totalorder %s26, 1
      %p219 = por %p217, %p218
      %p220 = scmp.ne.s32.totalorder %s209, %s210
      %p221 = scmp.eq.s32.totalorder %s26, 0
      %p222 = por %p220, %p221
      %p223 = scmp.ne.s32.totalorder %s209, %s210
      %p224 = scmp.eq.s32.totalorder %s27, 1
      %p225 = por %p223, %p224
      %p227 = scmp.ne.s32.totalorder %s210, %s226
      %p228 = scmp.eq.s32.totalorder %s27, 0
      %p229 = por %p227, %p228
      %p230 = scmp.le.s32.totalorder 1, %s21
      %p231 = scmp.lt.s32.totalorder %s21, 3
      %p232 = pnand %p230, %p231
      %p233 = pneg %p232
      // Predicated region
      $region9: #{tpu_custom_call.1} parent=5 // pred_check
        _
      $region10: #{tpu_custom_call.1} parent=5 // pred_check_branch
        %235 = sbr.rel (%p232) target = $region12
      $region11: #{tpu_custom_call.1} parent=5 // pred_region
        %s236 = ssub.s32 %s21, 1
        // Predicated region
        $region13: #{tpu_custom_call.1} parent=11 // pred_check
          %p237 = pneg %p54
        $region14: #{tpu_custom_call.1} parent=11 // pred_check_branch
          %239 = sbr.rel (%p237) target = $region16
        $region15: #{tpu_custom_call.1} parent=11 // pred_region
          _
        $region16: #{tpu_custom_call.1} parent=11 // pred_fallthru
          _
        // Predicated region
        $region17: #{tpu_custom_call.1} parent=11 // pred_check
          %p240 = pneg %p75
        $region18: #{tpu_custom_call.1} parent=11 // pred_check_branch
          %242 = sbr.rel (%p240) target = $region20
        $region19: #{tpu_custom_call.1} parent=11 // pred_region
          _
        $region20: #{tpu_custom_call.1} parent=11 // pred_fallthru
          _
        // Predicated region
        $region21: #{tpu_custom_call.1} parent=11 // pred_check
          %p243 = pneg %p152
        $region22: #{tpu_custom_call.1} parent=11 // pred_check_branch
          %245 = sbr.rel (%p243) target = $region24
        $region23: #{tpu_custom_call.1} parent=11 // pred_region
          _
        $region24: #{tpu_custom_call.1} parent=11 // pred_fallthru
          _
        // Predicated region
        $region25: #{tpu_custom_call.1} parent=11 // pred_check
          %p246 = pneg %p173
        $region26: #{tpu_custom_call.1} parent=11 // pred_check_branch
          %248 = sbr.rel (%p246) target = $region28
        $region27: #{tpu_custom_call.1} parent=11 // pred_region
          _
        $region28: #{tpu_custom_call.1} parent=11 // pred_fallthru
          _
        // Predicated region
        $region29: #{tpu_custom_call.1} parent=11 // pred_check
          %p249 = pneg %p194
        $region30: #{tpu_custom_call.1} parent=11 // pred_check_branch
          %251 = sbr.rel (%p249) target = $region32
        $region31: #{tpu_custom_call.1} parent=11 // pred_region
          _
        $region32: #{tpu_custom_call.1} parent=11 // pred_fallthru
          _
      $region12: #{tpu_custom_call.1} parent=5 // pred_fallthru
        _
      %p252 = scmp.lt.s32.totalorder %s21, 2
      // Predicated region
      $region33: #{tpu_custom_call.1} parent=5 // pred_check
        %p253 = pneg %p252
      $region34: #{tpu_custom_call.1} parent=5 // pred_check_branch
        %255 = sbr.rel (%p253) target = $region36
      $region35: #{tpu_custom_call.1} parent=5 // pred_region
        // Predicated region
        $region37: #{tpu_custom_call.1} parent=35 // pred_check
          %p256 = pneg %p97
        $region38: #{tpu_custom_call.1} parent=35 // pred_check_branch
          %258 = sbr.rel (%p256) target = $region40
        $region39: #{tpu_custom_call.1} parent=35 // pred_region
          %p259 = scmp.lt.s32.totalorder %s28, 1
          %s260 = scalar_select %p259, %s28, 1
          %p261 = scmp.lt.s32.totalorder %s29, 0
          %s262 = scalar_select %p261, %s29, 0
          %s263 = smul.addr %s260, 2
          %s264 = sadd.s32 %s262, %s263
          %s265 = smul.addr %s264, 8
          %s266 = scalar_lea.vmem %s2, %s265
        $region40: #{tpu_custom_call.1} parent=35 // pred_fallthru
          _
        // Predicated region
        $region41: #{tpu_custom_call.1} parent=35 // pred_check
          %p267 = pneg %p125
        $region42: #{tpu_custom_call.1} parent=35 // pred_check_branch
          %269 = sbr.rel (%p267) target = $region44
        $region43: #{tpu_custom_call.1} parent=35 // pred_region
          %s270 = sand.u32 %s115, 1
          %s271 = scalar_lea.sflag [#allocation5], %s270
          %s272 = sand.u32 %s115, 1
          %s273 = smul.addr %s272, 16
          %s274 = scalar_lea.vmem [#allocation4], %s273
          %s276 = ssub.s32 256, 256
          %277 = vsyncadd %s271, %s276
          %s278 = smul.addr %s28, 2
          %s279 = sadd.s32 %s29, %s278
          %s280 = smul.addr %s279, 128
          %s281 = scalar_lea.hbm %s3, %s280
          %s282 = sshll.u32 %s274, 4
          %s283 = int_to_ptr.vmem [resolvable:$true] %s282
          %288 = dma.hbm_to_vmem [thread:$0]  %s281, 256, %s283, %s271, 128, 128, 8
        $region44: #{tpu_custom_call.1} parent=35 // pred_fallthru
          _
      $region36: #{tpu_custom_call.1} parent=5 // pred_fallthru
        _
      %p289 = scmp.le.s32.totalorder 1, %s21
      %p290 = scmp.lt.s32.totalorder %s21, 3
      %p291 = pnand %p289, %p290
      %p292 = pneg %p291
      // Predicated region
      $region45: #{tpu_custom_call.1} parent=5 // pred_check
        _
      $region46: #{tpu_custom_call.1} parent=5 // pred_check_branch
        %294 = sbr.rel (%p291) target = $region48
      $region47: #{tpu_custom_call.1} parent=5 // pred_region
        %s295 = ssub.s32 %s21, 1
        %s296 = sand.u32 %s118, 1
        %s297 = scalar_lea.sflag [#allocation5], %s296
        %s298 = sand.u32 %s118, 1
        %s299 = smul.addr %s298, 16
        %s300 = scalar_lea.vmem [#allocation4], %s299
        // Predicated region
        $region49: #{tpu_custom_call.1} parent=47 // pred_check
          %p301 = pneg %p131
        $region50: #{tpu_custom_call.1} parent=47 // pred_check_branch
          %303 = sbr.rel (%p301) target = $region52
        $region51: #{tpu_custom_call.1} parent=47 // pred_region
          %304 = dma.done %s297, 256
        $region52: #{tpu_custom_call.1} parent=47 // pred_fallthru
          _
        %p305 = pneg %p54
        %p306 = pneg %p51
        %p307 = pneg %p75
        %p308 = pneg %p72
        %p309 = scmp.lt.s32.totalorder %s30, 1
        %s310 = scalar_select %p309, %s30, 1
        %p311 = scmp.lt.s32.totalorder %s31, 0
        %s312 = scalar_select %p311, %s31, 0
        %s313 = smul.addr %s310, 2
        %s314 = sadd.s32 %s312, %s313
        %s315 = smul.addr %s314, 8
        %s316 = scalar_lea.vmem %s2, %s315
        %p317 = pneg %p103
        %p318 = pneg %p100
        %s319 = sand.u32 %s118, 1
        %s320 = scalar_lea.sflag [#allocation5], %s319
        %s321 = sand.u32 %s118, 1
        %s322 = smul.addr %s321, 16
        %s323 = scalar_lea.vmem [#allocation4], %s322
        %p324 = pneg %p131
        %p325 = pneg %p128
        %p326 = pneg %p152
        %p327 = pneg %p149
        %p328 = pneg %p173
        %p329 = pneg %p170
        %p330 = pneg %p194
        %p331 = pneg %p191
        %p332 = pneg %p222
        %p333 = pneg %p219
        %s334 = sand.u32 %s209, 1
        %s335 = scalar_lea.sflag [#allocation6], %s334
        %s336 = sand.u32 %s209, 1
        %s337 = smul.addr %s336, 16
        %s338 = scalar_lea.vmem [#allocation7], %s337
        %p339 = scmp.lt.s32.totalorder %s30, 1
        %s340 = scalar_select %p339, %s30, 1
        %p341 = scmp.lt.s32.totalorder %s31, 0
        %s342 = scalar_select %p341, %s31, 0
        %s343 = smul.addr %s340, 2
        %s344 = sadd.s32 %s342, %s343
        %s345 = smul.addr %s344, 8
        %s346 = scalar_lea.vmem %s2, %s345
        %v347 = vld [vmem:[%s300] sm:$0xff]
        %v348 = vld [vmem:[%s300 + $0x8] sm:$0xff]
        %v349 = vld [vmem:[%s346] sm:$0xff]
        %v350 = vld [vmem:[%s346 + $0x8] sm:$0xff]
        %v351 = vld [vmem:[%s4] sm:$0xff]
        %v352 = vld [vmem:[%s4 + $0x8] sm:$0xff]
        %v353 = vld [vmem:[%s5] sm:$0xff]
        %v354 = vld [vmem:[%s5 + $0x8] sm:$0xff]
        %356 = vset.pattern.permute.xlu0 0
        %357 = vperm.xlu0 %356, %v351
        %v358 = vpop.permute.xlu0 %357
        %361 = vset.pattern.permute.xlu0 0
        %362 = vperm.xlu0 %361, %v352
        %v363 = vpop.permute.xlu0 %362
        %v365 = vmul.f32 %v347, %v358
        %v366 = vmul.f32 %v348, %v363
        %v367 = vadd.f32 %v349, %v365
        %v368 = vadd.f32 %v350, %v366
        %v369 = vmul.f32 %v367, 0.5
        %v370 = vmul.f32 %v368, 0.5
        %v371 = vmul.f32 %v367, 0.70710677
        %v372 = vmul.f32 %v368, 0.70710677
        %v373 = verf.f32.pop %v371
        %v374 = verf.f32.pop %v372
        %v375 = vadd.f32 %v373, 1.0
        %v376 = vadd.f32 %v374, 1.0
        %v377 = vmul.f32 %v369, %v375
        %v378 = vmul.f32 %v370, %v376
        %v379 = vld [vmem:[%s6] sm:$0xff]
        %v380 = vld [vmem:[%s6 + $0x8] sm:$0xff]
        %382 = vset.pattern.permute.xlu0 0
        %383 = vperm.xlu0 %382, %v379
        %v384 = vpop.permute.xlu0 %383
        %387 = vset.pattern.permute.xlu0 0
        %388 = vperm.xlu0 %387, %v380
        %v389 = vpop.permute.xlu0 %388
        %vm391 = vcmask 130048
        %v393 = vsel %vm391, %v353, 0
        %v396 = vsel %vm391, %v354, 0
        %398 = vmatprep.subr.mxu0 0.0
        %399 = vmatpush1.msra.mxu0 %v377
        %400 = vmatprep.subr.mxu0 0.0
        %401 = vmatpush1.msra.mxu0 %v378
        %402 = vmatprep.subr.mxu0 0.0
        %403 = vmatpush1.msra.mxu0 0.0
        %404 = vmatprep.subr.mxu0 0.0
        %405 = vmatpush1.msra.mxu0 0.0
        %406 = vmatprep.subr.mxu0 0.0
        %407 = vmatpush1.msra.mxu0 0.0
        %408 = vmatprep.subr.mxu0 0.0
        %409 = vmatpush1.msra.mxu0 0.0
        %410 = vmatprep.subr.mxu0 0.0
        %411 = vmatpush1.msra.mxu0 0.0
        %412 = vmatprep.subr.mxu0 0.0
        %413 = vmatpush1.msra.mxu0 0.0
        %414 = vmatprep.subr.mxu0 0.0
        %415 = vmatpush1.msra.mxu0 0.0
        %416 = vmatprep.subr.mxu0 0.0
        %417 = vmatpush1.msra.mxu0 0.0
        %418 = vmatprep.subr.mxu0 0.0
        %419 = vmatpush1.msra.mxu0 0.0
        %420 = vmatprep.subr.mxu0 0.0
        %421 = vmatpush1.msra.mxu0 0.0
        %422 = vmatprep.subr.mxu0 0.0
        %423 = vmatpush1.msra.mxu0 0.0
        %424 = vmatprep.subr.mxu0 0.0
        %425 = vmatpush1.msra.mxu0 0.0
        %426 = vmatprep.subr.mxu0 0.0
        %427 = vmatpush1.msra.mxu0 0.0
        %428 = vmatprep.subr.mxu0 0.0
        %429 = vmatpush1.msra.mxu0 0.0
        %430 = vmatprep.subr.mxu0 0.0
        %431 = vmatpush1.msra.mxu0 0.0
        %432 = vmatprep.subr.mxu0 0.0
        %433 = vmatpush1.msra.mxu0 0.0
        %434 = vmatprep.subr.mxu0 0.0
        %435 = vmatpush1.msra.mxu0 0.0
        %436 = vmatprep.subr.mxu0 0.0
        %437 = vmatpush1.msra.mxu0 0.0
        %438 = vmatprep.subr.mxu0 0.0
        %439 = vmatpush1.msra.mxu0 0.0
        %440 = vmatprep.subr.mxu0 0.0
        %441 = vmatpush1.msra.mxu0 0.0
        %442 = vmatprep.subr.mxu0 0.0
        %443 = vmatpush1.msra.mxu0 0.0
        %444 = vmatprep.subr.mxu0 0.0
        %445 = vmatpush1.msra.mxu0 0.0
        %446 = vmatprep.subr.mxu0 0.0
        %447 = vmatpush1.msra.mxu0 0.0
        %448 = vmatprep.subr.mxu0 0.0
        %449 = vmatpush1.msra.mxu0 0.0
        %450 = vmatprep.subr.mxu0 0.0
        %451 = vmatpush1.msra.mxu0 0.0
        %452 = vmatprep.subr.mxu0 0.0
        %453 = vmatpush1.msra.mxu0 0.0
        %454 = vmatprep.subr.mxu0 0.0
        %455 = vmatpush1.msra.mxu0 0.0
        %456 = vmatprep.subr.mxu0 0.0
        %457 = vmatpush1.msra.mxu0 0.0
        %458 = vmatprep.subr.mxu0 0.0
        %459 = vmatpush1.msra.mxu0 0.0
        %460 = vmatprep.subr.mxu0 0.0
        %461 = vmatpush1.msra.mxu0 0.0
        %462 = vmatprep.mubr.f32.mxu0 0.0
        %463 = vmatmul.mubr.f32.gmra.mrb[0].mxu0 %v393
        %v464 = vpop.f32.mrb[0].mxu0
        %v465 = vadd.f32 %v384, %v464
        %v466 = vpop.f32.mrb[0].mxu0
        %467 = vmatprep.mubr.f32.mxu0 0.0
        %468 = vmatmul.mubr.f32.gmra.mrb[0].mxu0 %v396
        %v469 = vpop.f32.mrb[0].mxu0
        %v470 = vadd.f32 %v389, %v469
        %v471 = vpop.f32.mrb[0].mxu0
        %472 = vdwg.mxu0
        %473 = vst [vmem:[%s338] sm:$0xff] %v465
        %474 = vst [vmem:[%s338 + $0x8] sm:$0xff] %v470
        %s475 = sand.u32 %s209, 1
        %s476 = scalar_lea.sflag [#allocation6], %s475
        %s477 = sand.u32 %s209, 1
        %s478 = smul.addr %s477, 16
        %s479 = scalar_lea.vmem [#allocation7], %s478
        // Predicated region
        $region53: #{tpu_custom_call.1} parent=47 // pred_check
          %p480 = pneg %p219
        $region54: #{tpu_custom_call.1} parent=47 // pred_check_branch
          %482 = sbr.rel (%p480) target = $region56
        $region55: #{tpu_custom_call.1} parent=47 // pred_region
          %s484 = ssub.s32 256, 256
          %485 = vsyncadd %s476, %s484
          %s486 = smul.addr %s30, 2
          %s487 = sadd.s32 %s31, %s486
          %s488 = smul.addr %s487, 128
          %s489 = scalar_lea.hbm %s7, %s488
          %s490 = sshll.u32 %s479, 4
          %s491 = int_to_ptr.vmem [resolvable:$true] %s490
          %496 = dma.vmem_to_hbm [thread:$0]  %s491, 256, %s489, %s476, 128, 128, 8
        $region56: #{tpu_custom_call.1} parent=47 // pred_fallthru
          _
      $region48: #{tpu_custom_call.1} parent=5 // pred_fallthru
        _
      %p497 = scmp.le.s32.totalorder 2, %s21
      // Predicated region
      $region57: #{tpu_custom_call.1} parent=5 // pred_check
        %p498 = pneg %p497
      $region58: #{tpu_custom_call.1} parent=5 // pred_check_branch
        %500 = sbr.rel (%p498) target = $region60
      $region59: #{tpu_custom_call.1} parent=5 // pred_region
        %s501 = ssub.s32 %s21, 2
        // Predicated region
        $region61: #{tpu_custom_call.1} parent=59 // pred_check
          %p502 = pneg %p225
        $region62: #{tpu_custom_call.1} parent=59 // pred_check_branch
          %504 = sbr.rel (%p502) target = $region64
        $region63: #{tpu_custom_call.1} parent=59 // pred_region
          %s505 = sand.u32 %s210, 1
          %s506 = scalar_lea.sflag [#allocation6], %s505
          %s507 = sand.u32 %s210, 1
          %s508 = smul.addr %s507, 16
          %s509 = scalar_lea.vmem [#allocation7], %s508
          %510 = dma.done %s506, 256
        $region64: #{tpu_custom_call.1} parent=59 // pred_fallthru
          _
      $region60: #{tpu_custom_call.1} parent=5 // pred_fallthru
        _
    $region6: #{tpu_custom_call.1} parent=1 // loop_footer
      %s25 = sadd.s32 1, %s21
    $region7: #{tpu_custom_call.1} parent=1 // loop_footer_branch
      %20 = sbr.rel target = $region3
    $region8: #{tpu_custom_call.1} parent=1 // loop_exit
      _
    %511 = vsyncpa [#allocation5], 1
    %s512 = scalar_lea.sflag [#allocation5], 1
    %513 = vsyncpa %s512, 1
    %514 = vsyncpa [#allocation6], 1
    %s515 = scalar_lea.sflag [#allocation6], 1
    %516 = vsyncpa %s515, 1

</llo_original>
